<compile_context>
chip_gen: v5e
topology: v5e:2x2
jax: 0.10.0
libtpu: 0.0.40
codegen_flags: <defaults>
</compile_context>

<pallas_src>
import functools

import jax
import jax.numpy as jnp
from jax.experimental import pallas as pl
from jax.experimental.pallas import tpu as pltpu


# --------------------------------------------------------------------------
# Kernel: two small MXU dots into one f32 accumulator, no epilogue.
# --------------------------------------------------------------------------
def _linear_step_kernel(x_ref, u_ref, ws_ref, wu_ref, out_ref):
    acc = jnp.dot(x_ref[...], ws_ref[...], preferred_element_type=jnp.float32)
    acc = acc + jnp.dot(u_ref[...], wu_ref[...], preferred_element_type=jnp.float32)
    out_ref[...] = acc.astype(out_ref.dtype)


# --------------------------------------------------------------------------
# One-time weight preparation (outside the hot path).  Kept in f32: the
# identity is folded into ws, so narrowing would quantize the x pass-through.
# --------------------------------------------------------------------------
def make_step_weights(A, B, dt):
    """Fold dt and the Euler identity into (ws, wu) so that
       next_state = state @ ws + action @ wu."""
    state_dim = A.shape[0]
    action_dim = B.shape[1]
    assert A.shape == (state_dim, state_dim)
    assert B.shape == (state_dim, action_dim)
    eye = jnp.eye(state_dim, dtype=jnp.float32)
    ws = (eye + dt * A.astype(jnp.float32)).T   # [S, S]
    wu = (dt * B.astype(jnp.float32)).T          # [A, S]
    return ws, wu


def make_derivative_weights(A, B):
    """Weights so that derivative = state @ ws + action @ wu."""
    return A.astype(jnp.float32).T, B.astype(jnp.float32).T


# --------------------------------------------------------------------------
# Batch-tile selection: large 8-aligned tiles within a VMEM budget, >= 2
# balanced grid steps when the batch allows it, never degenerate tiny tiles,
# never tb == batch for huge batches (grid handles the ragged last tile).
# --------------------------------------------------------------------------
def _round_up(x, m):
    return ((x + m - 1) // m) * m


def _pick_batch_tile(batch, bytes_per_row, *, vmem_budget=6 << 20,
                     max_tile=4096, min_tile=8):
    if batch <= min_tile:
        return max(batch, 1)
    # Rows whose double-buffered in+out tiles fit the budget (leaves headroom
    # under v5e's ~16 MiB scoped-VMEM default; trivial on v6e/v7x).
    fit_rows = max(min_tile,
                   (vmem_budget // max(2 * bytes_per_row, 1)) // min_tile * min_tile)
    cap = min(max_tile, fit_rows)
    # Aim for >= 2 balanced grid steps (v7x megacore + DMA/writeback overlap).
    half = _round_up(-(-batch // 2), min_tile)
    return max(min_tile, min(cap, half))


# --------------------------------------------------------------------------
# Shared launcher for forward / derivative (same kernel, different weights).
# --------------------------------------------------------------------------
def _launch_linear(state, action, ws, wu):
    batch, state_dim = state.shape
    action_dim = action.shape[1]
    assert ws.shape == (state_dim, state_dim)
    assert wu.shape == (action_dim, state_dim)

    in_bytes = (state_dim + action_dim) * jnp.dtype(state.dtype).itemsize
    out_bytes = state_dim * jnp.dtype(state.dtype).itemsize
    tb = _pick_batch_tile(batch, in_bytes + out_bytes)
    grid = (pl.cdiv(batch, tb),)

    return pl.pallas_call(
        _linear_step_kernel,
        out_shape=jax.ShapeDtypeStruct((batch, state_dim), state.dtype),
        grid_spec=pltpu.PrefetchScalarGridSpec(
            num_scalar_prefetch=0,
            grid=grid,
            in_specs=[
                # Activations: tiled on batch, streamed through the pipeline.
                pl.BlockSpec((tb, state_dim), lambda i: (i, 0)),
                pl.BlockSpec((tb, action_dim), lambda i: (i, 0)),
                # Weights: constant index_map -> VMEM-resident across tiles.
                pl.BlockSpec((state_dim, state_dim), lambda i: (0, 0)),
                pl.BlockSpec((action_dim, state_dim), lambda i: (0, 0)),
            ],
            out_specs=pl.BlockSpec((tb, state_dim), lambda i: (i, 0)),
        ),
        compiler_params=pltpu.CompilerParams(
            dimension_semantics=("parallel",)),
    )(state, action, ws, wu)


# --------------------------------------------------------------------------
# Public wrappers (explicit-Euler step / derivative).
# --------------------------------------------------------------------------
def base_dynamics_forward(state, action, ws, wu):
    """next_state = state + dt * (state @ A.T + action @ B.T), via fused ws/wu."""
    return _launch_linear(state, action, ws, wu)


def base_dynamics_derivative(state, action, wsd, wud):
    """dx/dt = state @ A.T + action @ B.T."""
    return _launch_linear(state, action, wsd, wud)


# --------------------------------------------------------------------------
# Plain-JAX references.
# --------------------------------------------------------------------------
def forward_reference(state, action, A, B, dt=0.01):
    return state + dt * (state @ A.T + action @ B.T)


def derivative_reference(state, action, A, B):
    return state @ A.T + action @ B.T


if __name__ == "__main__":
    key = jax.random.PRNGKey(0)
    k1, k2, k3, k4 = jax.random.split(key, 4)

    batch, state_dim, action_dim = 8, 32, 16
    dt = 0.01

    state = jax.random.normal(k1, (batch, state_dim), dtype=jnp.float32)
    action = jax.random.normal(k2, (batch, action_dim), dtype=jnp.float32)
    # Deterministic synthetic dynamics parameters.
    A = 0.1 * jax.random.normal(k3, (state_dim, state_dim), dtype=jnp.float32)
    B = 0.1 * jax.random.normal(k4, (state_dim, action_dim), dtype=jnp.float32)

    # One-time: fold dt + identity into fused step weights (f32, tiny).
    ws, wu = make_step_weights(A, B, dt)
    wsd, wud = make_derivative_weights(A, B)

    fwd = jax.jit(base_dynamics_forward)
    der = jax.jit(base_dynamics_derivative)

    next_state = jax.block_until_ready(fwd(state, action, ws, wu))
    deriv = jax.block_until_ready(der(state, action, wsd, wud))

    ref_next = forward_reference(state, action, A, B, dt=dt)
    ref_der = derivative_reference(state, action, A, B)

    assert next_state.shape == (batch, state_dim)
    assert deriv.shape == (batch, state_dim)
    assert jnp.allclose(next_state, ref_next, atol=1e-5, rtol=1e-5), "forward mismatch"
    assert jnp.allclose(deriv, ref_der, atol=1e-5, rtol=1e-5), "derivative mismatch"

    print("KERNEL_OK")
</pallas_src>

<mosaic_0001>
module attributes {stable_mosaic.version = 11 : i64} {
  func.func @_linear_step_kernel(%arg0: i32, %arg1: memref<8x32xf32, #tpu.memory_space<vmem>>, %arg2: memref<8x16xf32, #tpu.memory_space<vmem>>, %arg3: memref<32x32xf32, #tpu.memory_space<vmem>>, %arg4: memref<16x32xf32, #tpu.memory_space<vmem>>, %arg5: memref<8x32xf32, #tpu.memory_space<vmem>>) attributes {dimension_semantics = [#tpu.dimension_semantics<parallel>], iteration_bounds = array<i64: 1>, scalar_prefetch = 0 : i64, scratch_operands = 0 : i64, tpu.core_type = #tpu.core_type<tc>, window_params = [{transform_indices = @transform_0, window_bounds = array<i64: 8, 32>}, {transform_indices = @transform_1, window_bounds = array<i64: 8, 16>}, {pipeline_mode = #tpu.pipeline_mode<synchronous>, transform_indices = @transform_2, window_bounds = array<i64: 32, 32>}, {pipeline_mode = #tpu.pipeline_mode<synchronous>, transform_indices = @transform_3, window_bounds = array<i64: 16, 32>}, {transform_indices = @transform_4, window_bounds = array<i64: 8, 32>}]} {
    %c0 = arith.constant 0 : index
    %c0_0 = arith.constant 0 : index
    %0 = vector.load %arg1[%c0, %c0_0] : memref<8x32xf32, #tpu.memory_space<vmem>>, vector<8x32xf32>
    %c0_1 = arith.constant 0 : index
    %c0_2 = arith.constant 0 : index
    %1 = vector.load %arg3[%c0_1, %c0_2] : memref<32x32xf32, #tpu.memory_space<vmem>>, vector<32x32xf32>
    %cst = arith.constant dense<0.000000e+00> : vector<8x32xf32>
    %2 = tpu.matmul %0, %1, %cst {dimension_numbers = #tpu.dot_dimension_numbers<[1], [0], [0], [1], [0, 0, 1, 1], [], []>} : vector<8x32xf32>, vector<32x32xf32>, vector<8x32xf32> -> vector<8x32xf32>
    %c0_3 = arith.constant 0 : index
    %c0_4 = arith.constant 0 : index
    %3 = vector.load %arg2[%c0_3, %c0_4] : memref<8x16xf32, #tpu.memory_space<vmem>>, vector<8x16xf32>
    %c0_5 = arith.constant 0 : index
    %c0_6 = arith.constant 0 : index
    %4 = vector.load %arg4[%c0_5, %c0_6] : memref<16x32xf32, #tpu.memory_space<vmem>>, vector<16x32xf32>
    %cst_7 = arith.constant dense<0.000000e+00> : vector<8x32xf32>
    %5 = tpu.matmul %3, %4, %cst_7 {dimension_numbers = #tpu.dot_dimension_numbers<[1], [0], [0], [1], [0, 0, 1, 1], [], []>} : vector<8x16xf32>, vector<16x32xf32>, vector<8x32xf32> -> vector<8x32xf32>
    %6 = arith.addf %2, %5 : vector<8x32xf32>
    %c0_8 = arith.constant 0 : index
    %c0_9 = arith.constant 0 : index
    %7 = vector.load %arg5[%c0_8, %c0_9] : memref<8x32xf32, #tpu.memory_space<vmem>>, vector<8x32xf32>
    tpu.vector_store %arg5[%c0_8, %c0_9], %6 {strides = array<i32>} : memref<8x32xf32, #tpu.memory_space<vmem>>, vector<8x32xf32>,
    return
  }
  func.func @transform_0(%arg0: i32) -> (i32, i32) {
    %c0_i32 = arith.constant 0 : i32
    %c0_i32_0 = arith.constant 0 : i32
    return %arg0, %c0_i32 : i32, i32
  }
  func.func @transform_1(%arg0: i32) -> (i32, i32) {
    %c0_i32 = arith.constant 0 : i32
    %c0_i32_0 = arith.constant 0 : i32
    return %arg0, %c0_i32 : i32, i32
  }
  func.func @transform_2(%arg0: i32) -> (i32, i32) {
    %c0_i32 = arith.constant 0 : i32
    %c0_i32_0 = arith.constant 0 : i32
    %c0_i32_1 = arith.constant 0 : i32
    return %c0_i32, %c0_i32_0 : i32, i32
  }
  func.func @transform_3(%arg0: i32) -> (i32, i32) {
    %c0_i32 = arith.constant 0 : i32
    %c0_i32_0 = arith.constant 0 : i32
    %c0_i32_1 = arith.constant 0 : i32
    return %c0_i32, %c0_i32_0 : i32, i32
  }
  func.func @transform_4(%arg0: i32) -> (i32, i32) {
    %c0_i32 = arith.constant 0 : i32
    %c0_i32_0 = arith.constant 0 : i32
    return %arg0, %c0_i32 : i32, i32
  }
}

</mosaic_0001>

<llo_original>
// kernel: base_dynamics_forward.1
$region0: #{base_dynamics_forward.1}
  #allocation0 [shape = 'u32[]', space=smem, size = 0x4, offset = 0x4, fixed_abs, tag = 'smem constant byte address 0x4 - core index']
  #allocation1 [shape = 'u32[72,128]{1,0:T(1,128)}', space=vmem, size = 0x9000, scoped, tag = 'internal scratch']
  %s0 = inlined_call_operand.hbm [shape: f32[8,32], index: 0, kind: input, shape index: {}]
  %s1 = inlined_call_operand.hbm [shape: f32[8,16], index: 1, kind: input, shape index: {}]
  %s2 = inlined_call_operand.hbm [shape: f32[32,32], index: 2, kind: input, shape index: {}]
  %s3 = inlined_call_operand.hbm [shape: f32[16,32], index: 3, kind: input, shape index: {}]
  %s4 = inlined_call_operand.hbm [shape: f32[8,32], index: 4, kind: output, shape index: {}]
  %s5 = sld [smem:[#allocation0]]
  $region42: #{base_dynamics_forward.1} parent=0
    _
  %s7 = ssub.s32 1, %s5
  %s8 = scalar_select 0, %s7, %s5
  $region1: #{base_dynamics_forward.1} parent=0
    #allocation2 [shape = 'u8[4096]{0}', space=vmem, size = 0x1000, scoped, tag = 'input window, operand 0, single buffered']
    #allocation3 [shape = 's32[1]{0}', space=sflag, size = 0x4, scoped, tag = 'scoped memory for base_dynamics_forward.1']
    #allocation4 [shape = 's32[1]{0}', space=sflag, size = 0x4, scoped, tag = 'scoped memory for base_dynamics_forward.1']
    #allocation5 [shape = 'u8[4096]{0}', space=vmem, size = 0x1000, scoped, tag = 'input window, operand 1, single buffered']
    #allocation6 [shape = 's32[1]{0}', space=sflag, size = 0x4, scoped, tag = 'scoped memory for base_dynamics_forward.1']
    #allocation7 [shape = 'u8[16384]{0}', space=vmem, size = 0x4000, scoped, tag = 'input window, operand 2, single buffered']
    #allocation8 [shape = 'u8[8192]{0}', space=vmem, size = 0x2000, scoped, tag = 'input window, operand 3, single buffered']
    #allocation9 [shape = 's32[1]{0}', space=sflag, size = 0x4, scoped, tag = 'scoped memory for base_dynamics_forward.1']
    #allocation10 [shape = 'u8[4096]{0}', space=vmem, size = 0x1000, scoped, tag = 'output window, operand 0, single buffered']
    %9 = vsyncpa [#allocation3], 0
    %10 = vsyncpa [#allocation6], 0
    %11 = vsyncpa [#allocation9], 0
    %12 = vsyncpa [#allocation4], 0
    // Predicated region
    $region2: #{base_dynamics_forward.1} parent=1 // pred_check
      _
    $region3: #{base_dynamics_forward.1} parent=1 // pred_check_branch
      %14 = sbr.rel (0) target = $region5
    $region4: #{base_dynamics_forward.1} parent=1 // pred_region
      %16 = vsyncadd [#allocation3], 0
      %s18 = sshll.u32 %s0, 4
      %s19 = int_to_ptr.hbm [resolvable:$true] %s18
      %s20 = sshll.u32 [#allocation2], 4
      %s21 = int_to_ptr.vmem [resolvable:$true] %s20
      %23 = dma.hbm_to_vmem [thread:$0]  %s19, 128, %s21, [#allocation3]
    $region5: #{base_dynamics_forward.1} parent=1 // pred_fallthru
      _
    // Predicated region
    $region6: #{base_dynamics_forward.1} parent=1 // pred_check
      _
    $region7: #{base_dynamics_forward.1} parent=1 // pred_check_branch
      %25 = sbr.rel (0) target = $region9
    $region8: #{base_dynamics_forward.1} parent=1 // pred_region
      %27 = vsyncadd [#allocation6], 0
      %s29 = sshll.u32 %s1, 4
      %s30 = int_to_ptr.hbm [resolvable:$true] %s29
      %s31 = sshll.u32 [#allocation5], 4
      %s32 = int_to_ptr.vmem [resolvable:$true] %s31
      %34 = dma.hbm_to_vmem [thread:$0]  %s30, 128, %s32, [#allocation6]
    $region9: #{base_dynamics_forward.1} parent=1 // pred_fallthru
      _
    // Predicated region
    $region10: #{base_dynamics_forward.1} parent=1 // pred_check
      _
    $region11: #{base_dynamics_forward.1} parent=1 // pred_check_branch
      %36 = sbr.rel (0) target = $region13
    $region12: #{base_dynamics_forward.1} parent=1 // pred_region
      %38 = vsyncadd [#allocation6], 0
      %s39 = sshll.u32 %s2, 4
      %s40 = int_to_ptr.hbm [resolvable:$true] %s39
      %s41 = sshll.u32 [#allocation7], 4
      %s42 = int_to_ptr.vmem [resolvable:$true] %s41
      %47 = dma.hbm_to_vmem [thread:$0]  %s40, 512, %s42, [#allocation6], 128, 128, 8
    $region13: #{base_dynamics_forward.1} parent=1 // pred_fallthru
      _
    // Predicated region
    $region14: #{base_dynamics_forward.1} parent=1 // pred_check
      _
    $region15: #{base_dynamics_forward.1} parent=1 // pred_check_branch
      %49 = sbr.rel (0) target = $region17
    $region16: #{base_dynamics_forward.1} parent=1 // pred_region
      %51 = vsyncadd [#allocation9], 0
      %s52 = sshll.u32 %s3, 4
      %s53 = int_to_ptr.hbm [resolvable:$true] %s52
      %s54 = sshll.u32 [#allocation8], 4
      %s55 = int_to_ptr.vmem [resolvable:$true] %s54
      %60 = dma.hbm_to_vmem [thread:$0]  %s53, 256, %s55, [#allocation9], 128, 128, 8
    $region17: #{base_dynamics_forward.1} parent=1 // pred_fallthru
      _
    // Predicated region
    $region18: #{base_dynamics_forward.1} parent=1 // pred_check
      _
    $region19: #{base_dynamics_forward.1} parent=1 // pred_check_branch
      %62 = sbr.rel (0) target = $region21
    $region20: #{base_dynamics_forward.1} parent=1 // pred_region
      %64 = dma.done [#allocation3], 128
    $region21: #{base_dynamics_forward.1} parent=1 // pred_fallthru
      _
    // Predicated region
    $region22: #{base_dynamics_forward.1} parent=1 // pred_check
      _
    $region23: #{base_dynamics_forward.1} parent=1 // pred_check_branch
      %66 = sbr.rel (0) target = $region25
    $region24: #{base_dynamics_forward.1} parent=1 // pred_region
      %68 = dma.done [#allocation6], 128
    $region25: #{base_dynamics_forward.1} parent=1 // pred_fallthru
      _
    // Predicated region
    $region26: #{base_dynamics_forward.1} parent=1 // pred_check
      _
    $region27: #{base_dynamics_forward.1} parent=1 // pred_check_branch
      %70 = sbr.rel (0) target = $region29
    $region28: #{base_dynamics_forward.1} parent=1 // pred_region
      %72 = dma.done [#allocation6], 512
    $region29: #{base_dynamics_forward.1} parent=1 // pred_fallthru
      _
    // Predicated region
    $region30: #{base_dynamics_forward.1} parent=1 // pred_check
      _
    $region31: #{base_dynamics_forward.1} parent=1 // pred_check_branch
      %74 = sbr.rel (0) target = $region33
    $region32: #{base_dynamics_forward.1} parent=1 // pred_region
      %76 = dma.done [#allocation9], 256
    $region33: #{base_dynamics_forward.1} parent=1 // pred_fallthru
      _
    %v77 = vld [vmem:[#allocation2] sm:$0xff]
    %v78 = vld [vmem:[#allocation7] sm:$0xff]
    %v79 = vld [vmem:[#allocation7 + $0x8] sm:$0xff]
    %v80 = vld [vmem:[#allocation7 + $0x10] sm:$0xff]
    %v81 = vld [vmem:[#allocation7 + $0x18] sm:$0xff]
    %v82 = vld [vmem:[#allocation5] sm:$0xff]
    %v83 = vld [vmem:[#allocation8] sm:$0xff]
    %v84 = vld [vmem:[#allocation8 + $0x8] sm:$0xff]
    %vm85 = vcmask 130048
    %v87 = vsel %vm85, %v82, 0
    %89 = vmatpush.msra.mxu0 0.0
    %90 = vmatpush.msra.mxu0 0.0
    %91 = vmatpush.msra.mxu0 0.0
    %92 = vmatpush.msra.mxu0 0.0
    %93 = vmatpush.msra.mxu0 0.0
    %94 = vmatpush.msra.mxu0 0.0
    %95 = vmatpush.msra.mxu0 0.0
    %96 = vmatpush.msra.mxu0 0.0
    %97 = vmatpush.msra.mxu0 0.0
    %98 = vmatpush.msra.mxu0 0.0
    %99 = vmatpush.msra.mxu0 0.0
    %100 = vmatpush.msra.mxu0 0.0
    %101 = vmatpush.msra.mxu0 0.0
    %102 = vmatpush.msra.mxu0 0.0
    %103 = vmatpush.msra.mxu0 %v84
    %104 = vmatpush.msra.mxu0 %v83
    %105 = vmatmul.f32.gmra.mxu0 %v87
    %v106 = vpop.f32.mrf.mxu0
    %v107 = vadd.f32 0.0, %v106
    %108 = vdwg.mxu0
    %vm109 = vcmask 261120
    %v111 = vsel %vm109, %v77, 0
    %113 = vmatpush.msra.mxu0 0.0
    %114 = vmatpush.msra.mxu0 0.0
    %115 = vmatpush.msra.mxu0 0.0
    %116 = vmatpush.msra.mxu0 0.0
    %117 = vmatpush.msra.mxu0 0.0
    %118 = vmatpush.msra.mxu0 0.0
    %119 = vmatpush.msra.mxu0 0.0
    %120 = vmatpush.msra.mxu0 0.0
    %121 = vmatpush.msra.mxu0 0.0
    %122 = vmatpush.msra.mxu0 0.0
    %123 = vmatpush.msra.mxu0 0.0
    %124 = vmatpush.msra.mxu0 0.0
    %125 = vmatpush.msra.mxu0 %v81
    %126 = vmatpush.msra.mxu0 %v80
    %127 = vmatpush.msra.mxu0 %v79
    %128 = vmatpush.msra.mxu0 %v78
    %129 = vmatmul.f32.gmra.mxu0 %v111
    %v130 = vpop.f32.mrf.mxu0
    %v131 = vadd.f32 %v107, %v130
    %132 = vdwg.mxu0
    %133 = vst.msk [vmem:[#allocation10] sm:$0xff] %vm109, %v131
    // Predicated region
    $region34: #{base_dynamics_forward.1} parent=1 // pred_check
      _
    $region35: #{base_dynamics_forward.1} parent=1 // pred_check_branch
      %135 = sbr.rel (0) target = $region37
    $region36: #{base_dynamics_forward.1} parent=1 // pred_region
      %137 = vsyncadd [#allocation4], 0
      %s139 = sshll.u32 [#allocation10], 4
      %s140 = int_to_ptr.vmem [resolvable:$true] %s139
      %s141 = sshll.u32 %s4, 4
      %s142 = int_to_ptr.hbm [resolvable:$true] %s141
      %144 = dma.vmem_to_hbm [thread:$0]  %s140, 128, %s142, [#allocation4]
    $region37: #{base_dynamics_forward.1} parent=1 // pred_fallthru
      _
    // Predicated region
    $region38: #{base_dynamics_forward.1} parent=1 // pred_check
      _
    $region39: #{base_dynamics_forward.1} parent=1 // pred_check_branch
      %146 = sbr.rel (0) target = $region41
    $region40: #{base_dynamics_forward.1} parent=1 // pred_region
      %148 = dma.done [#allocation4], 128
    $region41: #{base_dynamics_forward.1} parent=1 // pred_fallthru
      _
    %149 = vsyncpa [#allocation3], 1
    %150 = vsyncpa [#allocation6], 1
    %151 = vsyncpa [#allocation9], 1
    %152 = vsyncpa [#allocation4], 1

</llo_original>
